<compile_context>
chip_gen: v7x
topology: tpu7x:2x2x1
jax: 0.10.0
libtpu: 0.0.40
codegen_flags: <defaults>
</compile_context>

<pallas_src>
from functools import partial

import jax
import jax.numpy as jnp
from jax import lax
from jax.experimental import pallas as pl
from jax.experimental.pallas import tpu as pltpu


# ----------------------------- small static helpers ----------------------------- #

def _cdiv(a, b):
    return -(-a // b)


def _round_up(a, b):
    return _cdiv(a, b) * b


def _sublane_multiple(itemsize):
    # Sub-32-bit dtypes pack along sublanes: f32 -> 8, bf16/f16 -> 16, int8/fp8 -> 32.
    return max(8, 32 // int(itemsize))


_BLOCK_BYTES_CACHE = None


def _default_block_bytes():
    """Per-step input block byte budget (Pallas double-buffers it)."""
    global _BLOCK_BYTES_CACHE
    if _BLOCK_BYTES_CACHE is None:
        budget = 4 * 1024 * 1024              # v5e/v6e: 8 MiB double-buffered, safe in 16 MiB scoped VMEM
        try:
            vmem = pltpu.get_tpu_info().vmem_capacity_bytes
            if vmem is not None and int(vmem) <= 64 * 1024 * 1024:
                budget = 8 * 1024 * 1024      # v7x: 64 MiB VMEM / 3.2 TB/s HBM -> bigger blocks
        except Exception:
            pass
        _BLOCK_BYTES_CACHE = budget
    return _BLOCK_BYTES_CACHE


# --------------------------- lane-dense (rows) kernel --------------------------- #

def _make_rows_kernel(tile_rows, num_row_tiles, rows_in_last, need_mask):
    """(Cb, tile_rows, 128) tiles -> resident (Cb, 1, 128) min/max accumulators."""

    def reduce_tile(x_ref, mask_last):
        tile = x_ref[...]                                          # (Cb, tile_rows, 128)
        if mask_last:
            # Only the final row tile overshoots R; replace the stale rows with the
            # tile's own first row (always valid), which cannot change min/max.
            row = lax.broadcasted_iota(jnp.int32, (1, tile_rows, 128), 1)
            tile = jnp.where(row < rows_in_last, tile, tile[:, 0:1, :])
        return (jnp.min(tile, axis=1, keepdims=True),
                jnp.max(tile, axis=1, keepdims=True))

    def accumulate(t, min_ref, max_ref, pmin, pmax):
        @pl.when(t == 0)
        def _():
            min_ref[...] = pmin
            max_ref[...] = pmax

        @pl.when(t != 0)
        def _():
            min_ref[...] = jnp.minimum(min_ref[...], pmin)
            max_ref[...] = jnp.maximum(max_ref[...], pmax)

    def kernel(x_ref, min_ref, max_ref):
        t = pl.program_id(1)
        if not need_mask:
            pmin, pmax = reduce_tile(x_ref, False)
            accumulate(t, min_ref, max_ref, pmin, pmax)
        else:
            @pl.when(t == num_row_tiles - 1)        # mask only the ragged last tile
            def _():
                pmin, pmax = reduce_tile(x_ref, True)
                accumulate(t, min_ref, max_ref, pmin, pmax)

            @pl.when(t != num_row_tiles - 1)
            def _():
                pmin, pmax = reduce_tile(x_ref, False)
                accumulate(t, min_ref, max_ref, pmin, pmax)

    return kernel


def _minmax_rows(y3, cb, tile_rows):
    """y3: (N, R, 128) lane-dense view. Returns (N, 1, 128) per-row min/max partials."""
    N, R, _ = y3.shape
    num_row_tiles = _cdiv(R, tile_rows)
    num_ch_blocks = _cdiv(N, cb)
    rows_in_last = R - (num_row_tiles - 1) * tile_rows
    need_mask = rows_in_last != tile_rows

    kernel = _make_rows_kernel(tile_rows, num_row_tiles, rows_in_last, need_mask)

    return pl.pallas_call(
        kernel,
        out_shape=(
            jax.ShapeDtypeStruct((N, 1, 128), y3.dtype),
            jax.ShapeDtypeStruct((N, 1, 128), y3.dtype),
        ),
        grid_spec=pltpu.PrefetchScalarGridSpec(
            num_scalar_prefetch=0,
            grid=(num_ch_blocks, num_row_tiles),
            in_specs=[pl.BlockSpec((cb, tile_rows, 128), lambda c, t: (c, t, 0))],
            out_specs=[
                pl.BlockSpec((cb, 1, 128), lambda c, t: (c, 0, 0)),
                pl.BlockSpec((cb, 1, 128), lambda c, t: (c, 0, 0)),
            ],
        ),
        compiler_params=pltpu.CompilerParams(
            dimension_semantics=("parallel", "arbitrary"),
        ),
    )(y3)


# ----------------------- full-width kernel (ragged lane dim) -------------------- #

def _full_width_kernel(x_ref, min_ref, max_ref):
    tile = x_ref[...]                                              # (Cb, inner)
    min_ref[...] = jnp.min(tile, axis=1, keepdims=True)
    max_ref[...] = jnp.max(tile, axis=1, keepdims=True)


def _minmax_full(y2, cb):
    """y2: (N, L) with L not a multiple of 128. Single-pass full-width reduction."""
    N, L = y2.shape
    num_ch_blocks = _cdiv(N, cb)
    return pl.pallas_call(
        _full_width_kernel,
        out_shape=(
            jax.ShapeDtypeStruct((N, 1), y2.dtype),
            jax.ShapeDtypeStruct((N, 1), y2.dtype),
        ),
        grid_spec=pltpu.PrefetchScalarGridSpec(
            num_scalar_prefetch=0,
            grid=(num_ch_blocks,),
            in_specs=[pl.BlockSpec((cb, L), lambda c: (c, 0))],
            out_specs=[
                pl.BlockSpec((cb, 1), lambda c: (c, 0)),
                pl.BlockSpec((cb, 1), lambda c: (c, 0)),
            ],
        ),
        compiler_params=pltpu.CompilerParams(
            dimension_semantics=("parallel",),
        ),
    )(y2)


# -------------------------------- block planning -------------------------------- #

def _plan_rows(N, R, itemsize, block_bytes):
    sub = _sublane_multiple(itemsize)
    row_bytes = 128 * itemsize
    rows_budget = max(sub, block_bytes // row_bytes)
    if R <= rows_budget:
        tile_rows = R                                   # full extent -> always layout-legal
        cb = max(1, min(N, rows_budget // R))           # pack channels into the byte budget
        if N >= 2 and _cdiv(N, cb) < 2:                 # keep >=2 parallel blocks for v7x megacore
            cb = _cdiv(N, 2)
    else:
        cb = 1                                          # one channel already fills the budget
        tile_rows = max(sub, (rows_budget // sub) * sub)
    return cb, tile_rows


def _plan_full(N, L, itemsize, block_bytes):
    sub = _sublane_multiple(itemsize)
    row_bytes = _round_up(L, 128) * itemsize            # lane-padded row footprint in VMEM
    cb = (block_bytes // row_bytes // sub) * sub        # sublane-aligned channel block
    if cb <= 0:
        cb = min(N, sub)
    if cb >= N:
        cb = N
        if N > sub:                                     # split for >=2 blocks when alignment allows
            half = _round_up(_cdiv(N, 2), sub)
            if half < N:
                cb = half
    return cb


# ----------------------------------- wrapper ------------------------------------ #

_MIN_KERNEL_ELEMS = 1024                 # below this a kernel launch is not worth it
_RAGGED_BLOCK_CAP = 6 * 1024 * 1024      # per-block cap for the full-width path


def per_channel_min_max(x, ch_axis=0, block_bytes=None):
    """Per-channel min/max over all axes except `ch_axis`. Returns float32 (C,), (C,)."""
    if block_bytes is None:
        block_bytes = _default_block_bytes()
    return _per_channel_min_max(x, ch_axis=int(ch_axis), block_bytes=int(block_bytes))


@partial(jax.jit, static_argnames=("ch_axis", "block_bytes"))
def _per_channel_min_max(x, ch_axis, block_bytes):
    ch_axis = ch_axis % x.ndim if x.ndim else 0
    shape = x.shape
    outer = 1
    for d in shape[:ch_axis]:
        outer *= int(d)
    C = int(shape[ch_axis])
    inner = 1
    for d in shape[ch_axis + 1:]:
        inner *= int(d)
    N = outer * C
    itemsize = int(jnp.dtype(x.dtype).itemsize)

    path = "jax"
    cb_full = None
    if N * inner >= _MIN_KERNEL_ELEMS and inner >= 1:
        if inner % 128 == 0:
            path = "rows"
        else:
            cb_full = _plan_full(N, inner, itemsize, block_bytes)
            if cb_full * _round_up(inner, 128) * itemsize <= max(block_bytes, _RAGGED_BLOCK_CAP):
                path = "full"

    if path == "rows":
        R = inner // 128
        cb, tile_rows = _plan_rows(N, R, itemsize, block_bytes)
        mn_p, mx_p = _minmax_rows(x.reshape(N, R, 128), cb, tile_rows)   # free bitcast reshape
        ch_min = jnp.min(mn_p.reshape(outer, C, 128), axis=(0, 2))       # tiny JAX epilogue
        ch_max = jnp.max(mx_p.reshape(outer, C, 128), axis=(0, 2))
    elif path == "full":
        mn_p, mx_p = _minmax_full(x.reshape(N, inner), cb_full)          # free bitcast reshape
        ch_min = jnp.min(mn_p.reshape(outer, C), axis=0)
        ch_max = jnp.max(mx_p.reshape(outer, C), axis=0)
    else:
        y = x.reshape(outer, C, inner)                                   # tiny / oversize-ragged fallback
        ch_min = jnp.min(y, axis=(0, 2))
        ch_max = jnp.max(y, axis=(0, 2))

    return ch_min.astype(jnp.float32), ch_max.astype(jnp.float32)


# ---------------------------------- the module ---------------------------------- #

class PerChannelMinMaxObserver:
    """JAX/Pallas counterpart of brocolli's PerChannelMinMaxObserver."""

    def __init__(self, ch_axis=0, bit=8):
        self.bit = bit
        self.ch_axis = ch_axis
        self.eps = float(jnp.finfo(jnp.float32).eps)
        self.min_vals = None            # mirrors the empty torch buffers
        self.max_vals = None
        self.input_shape = None
        self.lsq_enabled = False

    def forward(self, x):
        self.input_shape = x.shape
        if x.size == 0:
            return x
        mn, mx = per_channel_min_max(x, ch_axis=self.ch_axis)
        if self.min_vals is None or self.min_vals.size == 0:
            self.min_vals, self.max_vals = mn, mx
        else:
            # merge with running stats, as the PyTorch observer does
            self.min_vals = jnp.minimum(mn, self.min_vals)
            self.max_vals = jnp.maximum(mx, self.max_vals)
        return x                         # observer is identity on the data path

    def calculate_qparams(self):
        quant_min, quant_max = -127, 127
        min_val_neg = jnp.minimum(self.min_vals, 0.0)
        max_val_pos = jnp.maximum(self.max_vals, 0.0)
        max_val_pos = jnp.maximum(-min_val_neg, max_val_pos)
        scale = max_val_pos / (float(quant_max - quant_min) / 2.0)
        scale = jnp.maximum(scale, self.eps)
        return scale

    __call__ = forward


if __name__ == "__main__":
    key = jax.random.PRNGKey(0)
    ks = jax.random.split(key, 6)

    # --- primary example: NCHW tensor, per-channel over axis 0 (module default) ---
    x = jax.random.normal(ks[0], (2, 4, 16, 16), dtype=jnp.float32)
    obs = PerChannelMinMaxObserver(ch_axis=0, bit=8)
    y = obs(x)
    scale = obs.calculate_qparams()
    jax.block_until_ready((y, obs.min_vals, obs.max_vals, scale))

    ref = x.reshape(2, -1)
    ref_min, ref_max = jnp.min(ref, axis=1), jnp.max(ref, axis=1)
    assert jnp.array_equal(y, x)
    assert jnp.allclose(obs.min_vals, ref_min)
    assert jnp.allclose(obs.max_vals, ref_max)
    ref_scale = jnp.maximum(
        jnp.maximum(-jnp.minimum(ref_min, 0.0), jnp.maximum(ref_max, 0.0)) / 127.0,
        jnp.finfo(jnp.float32).eps,
    )
    assert jnp.allclose(scale, ref_scale)

    # --- second batch: running min/max must merge with prior stats ---
    x2 = 3.0 * jax.random.normal(ks[1], (2, 4, 16, 16), dtype=jnp.float32)
    obs(x2)
    ref2 = x2.reshape(2, -1)
    assert jnp.allclose(obs.min_vals, jnp.minimum(ref_min, jnp.min(ref2, axis=1)))
    assert jnp.allclose(obs.max_vals, jnp.maximum(ref_max, jnp.max(ref2, axis=1)))

    # --- ch_axis=1, 128-aligned inner: channel-packed blocks, no transpose copy ---
    x3 = jax.random.normal(ks[2], (2, 6, 16, 16), dtype=jnp.float32)
    mn3, mx3 = per_channel_min_max(x3, ch_axis=1)
    ref3 = jnp.moveaxis(x3, 1, 0).reshape(6, -1)
    assert jnp.allclose(mn3, jnp.min(ref3, axis=1))
    assert jnp.allclose(mx3, jnp.max(ref3, axis=1))

    # --- ragged inner (16*33 = 528, not a multiple of 128): full-width path ---
    x4 = jax.random.normal(ks[3], (3, 5, 16, 33), dtype=jnp.float32)
    mn4, mx4 = per_channel_min_max(x4, ch_axis=1)
    ref4 = jnp.moveaxis(x4, 1, 0).reshape(5, -1)
    assert jnp.allclose(mn4, jnp.min(ref4, axis=1))
    assert jnp.allclose(mx4, jnp.max(ref4, axis=1))

    # --- rows path, default budget: full-R tiles + a partial boundary channel block ---
    x5 = jax.random.normal(ks[4], (5, 4, 9, 128), dtype=jnp.float32)   # R = 36 rows/channel
    ref5 = x5.reshape(5, -1)
    mn5a, mx5a = per_channel_min_max(x5, ch_axis=0)
    assert jnp.allclose(mn5a, jnp.min(ref5, axis=1))
    assert jnp.allclose(mx5a, jnp.max(ref5, axis=1))

    # --- rows path, tiny blocks: multi-tile accumulation with a ragged last row tile ---
    mn5b, mx5b = per_channel_min_max(x5, ch_axis=0, block_bytes=8 * 128 * 4)
    assert jnp.allclose(mn5b, jnp.min(ref5, axis=1))
    assert jnp.allclose(mx5b, jnp.max(ref5, axis=1))

    # --- bf16 input: dtype-aware 16-sublane row tiles ---
    x6 = jax.random.normal(ks[5], (4, 48, 128), dtype=jnp.bfloat16)    # R = 48 rows/channel
    mn6, mx6 = per_channel_min_max(x6, ch_axis=0, block_bytes=16 * 128 * 2)
    ref6 = x6.astype(jnp.float32).reshape(4, -1)
    assert jnp.allclose(mn6, jnp.min(ref6, axis=1))
    assert jnp.allclose(mx6, jnp.max(ref6, axis=1))

    jax.block_until_ready((mn3, mx3, mn4, mx4, mn5a, mx5a, mn5b, mx5b, mn6, mx6))
    print("KERNEL_OK")
</pallas_src>

<mosaic_0001>
module attributes {stable_mosaic.version = 11 : i64} {
  func.func @kernel(%arg0: i32, %arg1: i32, %arg2: memref<1x8x128xf32, #tpu.memory_space<vmem>>, %arg3: memref<1x1x128xf32, #tpu.memory_space<vmem>>, %arg4: memref<1x1x128xf32, #tpu.memory_space<vmem>>) attributes {dimension_semantics = [#tpu.dimension_semantics<parallel>, #tpu.dimension_semantics<arbitrary>], iteration_bounds = array<i64: 2, 1>, scalar_prefetch = 0 : i64, scratch_operands = 0 : i64, tpu.core_type = #tpu.core_type<tc>, window_params = [{transform_indices = @transform_0, window_bounds = array<i64: 1, 8, 128>}, {transform_indices = @transform_1, window_bounds = array<i64: 1, 1, 128>}, {transform_indices = @transform_2, window_bounds = array<i64: 1, 1, 128>}]} {
    %c0 = arith.constant 0 : index
    %c0_0 = arith.constant 0 : index
    %c0_1 = arith.constant 0 : index
    %0 = vector.load %arg2[%c0, %c0_0, %c0_1] : memref<1x8x128xf32, #tpu.memory_space<vmem>>, vector<1x8x128xf32>
    %cst = arith.constant dense<0x7F800000> : vector<1x128xf32>
    %1 = vector.multi_reduction <minimumf>, %0, %cst [1] : vector<1x8x128xf32> to vector<1x128xf32>
    %2 = vector.shape_cast %1 : vector<1x128xf32> to vector<1x1x128xf32>
    %cst_2 = arith.constant dense<0xFF800000> : vector<1x128xf32>
    %3 = vector.multi_reduction <maximumf>, %0, %cst_2 [1] : vector<1x8x128xf32> to vector<1x128xf32>
    %4 = vector.shape_cast %3 : vector<1x128xf32> to vector<1x1x128xf32>
    %c0_i32 = arith.constant 0 : i32
    %5 = arith.cmpi eq, %arg1, %c0_i32 : i32
    %6 = arith.extui %5 : i1 to i32
    %c0_i32_3 = arith.constant 0 : i32
    %7 = arith.cmpi ne, %6, %c0_i32_3 : i32
    scf.if %7 {
      %c0_6 = arith.constant 0 : index
      %c0_7 = arith.constant 0 : index
      %c0_8 = arith.constant 0 : index
      %11 = vector.load %arg3[%c0_6, %c0_7, %c0_8] : memref<1x1x128xf32, #tpu.memory_space<vmem>>, vector<1x1x128xf32>
      tpu.vector_store %arg3[%c0_6, %c0_7, %c0_8], %2 {strides = array<i32>} : memref<1x1x128xf32, #tpu.memory_space<vmem>>, vector<1x1x128xf32>,
      %c0_9 = arith.constant 0 : index
      %c0_10 = arith.constant 0 : index
      %c0_11 = arith.constant 0 : index
      %12 = vector.load %arg4[%c0_9, %c0_10, %c0_11] : memref<1x1x128xf32, #tpu.memory_space<vmem>>, vector<1x1x128xf32>
      tpu.vector_store %arg4[%c0_9, %c0_10, %c0_11], %4 {strides = array<i32>} : memref<1x1x128xf32, #tpu.memory_space<vmem>>, vector<1x1x128xf32>,
    } else {
    }
    %c0_i32_4 = arith.constant 0 : i32
    %8 = arith.cmpi ne, %arg1, %c0_i32_4 : i32
    %9 = arith.extui %8 : i1 to i32
    %c0_i32_5 = arith.constant 0 : i32
    %10 = arith.cmpi ne, %9, %c0_i32_5 : i32
    scf.if %10 {
      %c0_6 = arith.constant 0 : index
      %c0_7 = arith.constant 0 : index
      %c0_8 = arith.constant 0 : index
      %11 = vector.load %arg3[%c0_6, %c0_7, %c0_8] : memref<1x1x128xf32, #tpu.memory_space<vmem>>, vector<1x1x128xf32>
      %12 = arith.minimumf %11, %2 : vector<1x1x128xf32>
      %c0_9 = arith.constant 0 : index
      %c0_10 = arith.constant 0 : index
      %c0_11 = arith.constant 0 : index
      %13 = vector.load %arg3[%c0_9, %c0_10, %c0_11] : memref<1x1x128xf32, #tpu.memory_space<vmem>>, vector<1x1x128xf32>
      tpu.vector_store %arg3[%c0_9, %c0_10, %c0_11], %12 {strides = array<i32>} : memref<1x1x128xf32, #tpu.memory_space<vmem>>, vector<1x1x128xf32>,
      %c0_12 = arith.constant 0 : index
      %c0_13 = arith.constant 0 : index
      %c0_14 = arith.constant 0 : index
      %14 = vector.load %arg4[%c0_12, %c0_13, %c0_14] : memref<1x1x128xf32, #tpu.memory_space<vmem>>, vector<1x1x128xf32>
      %15 = arith.maximumf %14, %4 : vector<1x1x128xf32>
      %c0_15 = arith.constant 0 : index
      %c0_16 = arith.constant 0 : index
      %c0_17 = arith.constant 0 : index
      %16 = vector.load %arg4[%c0_15, %c0_16, %c0_17] : memref<1x1x128xf32, #tpu.memory_space<vmem>>, vector<1x1x128xf32>
      tpu.vector_store %arg4[%c0_15, %c0_16, %c0_17], %15 {strides = array<i32>} : memref<1x1x128xf32, #tpu.memory_space<vmem>>, vector<1x1x128xf32>,
    } else {
    }
    return
  }
  func.func @transform_0(%arg0: i32, %arg1: i32) -> (i32, i32, i32) {
    %c0_i32 = arith.constant 0 : i32
    %c0_i32_0 = arith.constant 0 : i32
    return %arg0, %arg1, %c0_i32 : i32, i32, i32
  }
  func.func @transform_1(%arg0: i32, %arg1: i32) -> (i32, i32, i32) {
    %c0_i32 = arith.constant 0 : i32
    %c0_i32_0 = arith.constant 0 : i32
    %c0_i32_1 = arith.constant 0 : i32
    return %arg0, %c0_i32, %c0_i32_0 : i32, i32, i32
  }
  func.func @transform_2(%arg0: i32, %arg1: i32) -> (i32, i32, i32) {
    %c0_i32 = arith.constant 0 : i32
    %c0_i32_0 = arith.constant 0 : i32
    %c0_i32_1 = arith.constant 0 : i32
    return %arg0, %c0_i32, %c0_i32_0 : i32, i32, i32
  }
}

</mosaic_0001>

<llo_original>
// kernel: _per_channel_min_max.1
$region0: #{_per_channel_min_max.1}
  #allocation0 [shape = 'u32[]', space=smem, size = 0x4, offset = 0x4, fixed_abs, tag = 'smem constant byte address 0x4 - core index']
  #allocation1 [shape = 'u32[144,128]{1,0:T(1,128)}', space=vmem, size = 0x12000, scoped, tag = 'internal scratch']
  %s0 = inlined_call_operand.vmem [shape: f32[2,8,128], index: 0, kind: input, shape index: {}]
  %s1 = inlined_call_operand.vmem [shape: f32[2,1,128], index: 1, kind: output, shape index: {0}]
  %s2 = inlined_call_operand.vmem [shape: f32[2,1,128], index: 2, kind: output, shape index: {1}]
  %3 = xla_tuple %s1, %s2
  %s4 = sld [smem:[#allocation0]]
  $region53: #{_per_channel_min_max.1} parent=0
    _
  %s6 = ssub.s32 1, %s4
  %s7 = scalar_select 0, %s6, %s4
  loop: start=0, step=1, limit=4
  $region2: #{_per_channel_min_max.1} parent=0 // loop_pre_header
    _
  $region3: #{_per_channel_min_max.1} parent=0 // loop_header
    %s9 = sphi 0, %s13
    %p10 = scmp.ge.s32.totalorder %s9, 4
    %s16 = sphi 0, %s28
    %s17 = sphi 0, %s24
    %s18 = sphi 0, %s16
    %s19 = sphi 0, %s17
    %s20 = sphi 0, %s18
    %s21 = sphi 0, %s19
    %s33 = sphi 0, %s35
    %s36 = sphi 0, %s33
    %s37 = sphi 0, %s36
    %s53 = sphi 0, %s37
    %s59 = sphi 0, %s61
    %s62 = sphi 0, %s59
    %s63 = sphi 0, %s62
    %s79 = sphi 0, %s63
    %s85 = sphi 0, %s87
    %s88 = sphi 0, %s85
    %s89 = sphi 0, %s88
    %s105 = sphi 0, %s89
  $region4: #{_per_channel_min_max.1} parent=0 // loop_header_branch
    %12 = sbr.rel (%p10) target = $region8
  $region5: #{_per_channel_min_max.1} parent=0 // loop_body
    %s14 = ssub.s32 %s9, 1
    %s15 = ssub.s32 %s9, 2
    %s22 = sadd.s32 1, %s17
    %p23 = scmp.ge.s32.totalorder %s22, 1
    %s24 = scalar_select %p23, 0, %s22
    %s25 = sadd.s32 1, %s16
    %s26 = scalar_select %p23, %s25, %s16
    %p27 = scmp.ge.s32.totalorder %s26, 2
    %s28 = scalar_select %p27, 0, %s26
    %s29 = ssub.s32 %s16, %s28
    %s30 = ssub.s32 %s17, %s24
    %s31 = sor.u32 %s29, %s30
    %p32 = scmp.eq.s32.totalorder %s31, 0
    %s34 = sadd.s32 %s33, 1
    %s35 = scalar_select %p32, %s33, %s34
    %p38 = pneg %p32
    %p39 = scmp.eq.s32.totalorder %s9, 1
    %p40 = por %p38, %p39
    %p41 = scmp.ne.s32.totalorder %s33, %s36
    %p42 = scmp.eq.s32.totalorder %s9, 0
    %p43 = por %p41, %p42
    %p44 = scmp.ne.s32.totalorder %s33, %s36
    %p45 = scmp.eq.s32.totalorder %s14, 1
    %p46 = por %p44, %p45
    %p47 = scmp.ne.s32.totalorder %s36, %s37
    %p48 = scmp.eq.s32.totalorder %s14, 0
    %p49 = por %p47, %p48
    %p50 = scmp.ne.s32.totalorder %s36, %s37
    %p51 = scmp.eq.s32.totalorder %s15, 1
    %p52 = por %p50, %p51
    %p54 = scmp.ne.s32.totalorder %s37, %s53
    %p55 = scmp.eq.s32.totalorder %s15, 0
    %p56 = por %p54, %p55
    %s57 = ssub.s32 %s16, %s28
    %p58 = scmp.eq.s32.totalorder %s57, 0
    %s60 = sadd.s32 %s59, 1
    %s61 = scalar_select %p58, %s59, %s60
    %p64 = pneg %p58
    %p65 = scmp.eq.s32.totalorder %s9, 1
    %p66 = por %p64, %p65
    %p67 = scmp.ne.s32.totalorder %s59, %s62
    %p68 = scmp.eq.s32.totalorder %s9, 0
    %p69 = por %p67, %p68
    %p70 = scmp.ne.s32.totalorder %s59, %s62
    %p71 = scmp.eq.s32.totalorder %s14, 1
    %p72 = por %p70, %p71
    %p73 = scmp.ne.s32.totalorder %s62, %s63
    %p74 = scmp.eq.s32.totalorder %s14, 0
    %p75 = por %p73, %p74
    %p76 = scmp.ne.s32.totalorder %s62, %s63
    %p77 = scmp.eq.s32.totalorder %s15, 1
    %p78 = por %p76, %p77
    %p80 = scmp.ne.s32.totalorder %s63, %s79
    %p81 = scmp.eq.s32.totalorder %s15, 0
    %p82 = por %p80, %p81
    %s83 = ssub.s32 %s16, %s28
    %p84 = scmp.eq.s32.totalorder %s83, 0
    %s86 = sadd.s32 %s85, 1
    %s87 = scalar_select %p84, %s85, %s86
    %p90 = pneg %p84
    %p91 = scmp.eq.s32.totalorder %s9, 1
    %p92 = por %p90, %p91
    %p93 = scmp.ne.s32.totalorder %s85, %s88
    %p94 = scmp.eq.s32.totalorder %s9, 0
    %p95 = por %p93, %p94
    %p96 = scmp.ne.s32.totalorder %s85, %s88
    %p97 = scmp.eq.s32.totalorder %s14, 1
    %p98 = por %p96, %p97
    %p99 = scmp.ne.s32.totalorder %s88, %s89
    %p100 = scmp.eq.s32.totalorder %s14, 0
    %p101 = por %p99, %p100
    %p102 = scmp.ne.s32.totalorder %s88, %s89
    %p103 = scmp.eq.s32.totalorder %s15, 1
    %p104 = por %p102, %p103
    %p106 = scmp.ne.s32.totalorder %s89, %s105
    %p107 = scmp.eq.s32.totalorder %s15, 0
    %p108 = por %p106, %p107
    %p109 = scmp.le.s32.totalorder 1, %s9
    %p110 = scmp.lt.s32.totalorder %s9, 3
    %p111 = pnand %p109, %p110
    %p112 = pneg %p111
    // Predicated region
    $region9: #{_per_channel_min_max.1} parent=5 // pred_check
      _
    $region10: #{_per_channel_min_max.1} parent=5 // pred_check_branch
      %114 = sbr.rel (%p111) target = $region12
    $region11: #{_per_channel_min_max.1} parent=5 // pred_region
      %s115 = ssub.s32 %s9, 1
    $region12: #{_per_channel_min_max.1} parent=5 // pred_fallthru
      _
    %p116 = scmp.lt.s32.totalorder %s9, 2
    // Predicated region
    $region13: #{_per_channel_min_max.1} parent=5 // pred_check
      %p117 = pneg %p116
    $region14: #{_per_channel_min_max.1} parent=5 // pred_check_branch
      %119 = sbr.rel (%p117) target = $region16
    $region15: #{_per_channel_min_max.1} parent=5 // pred_region
      // Predicated region
      $region17: #{_per_channel_min_max.1} parent=15 // pred_check
        %p120 = pneg %p43
      $region18: #{_per_channel_min_max.1} parent=15 // pred_check_branch
        %122 = sbr.rel (%p120) target = $region20
      $region19: #{_per_channel_min_max.1} parent=15 // pred_region
        %p123 = scmp.lt.s32.totalorder %s16, 1
        %s124 = scalar_select %p123, %s16, 1
        %p125 = scmp.lt.s32.totalorder %s17, 0
        %s126 = scalar_select %p125, %s17, 0
        %s127 = sadd.s32 %s126, %s124
        %s128 = smul.addr %s127, 8
        %s129 = scalar_lea.vmem %s0, %s128
      $region20: #{_per_channel_min_max.1} parent=15 // pred_fallthru
        _
    $region16: #{_per_channel_min_max.1} parent=5 // pred_fallthru
      _
    %p130 = scmp.le.s32.totalorder 1, %s9
    %p131 = scmp.lt.s32.totalorder %s9, 3
    %p132 = pnand %p130, %p131
    %p133 = pneg %p132
    // Predicated region
    $region21: #{_per_channel_min_max.1} parent=5 // pred_check
      _
    $region22: #{_per_channel_min_max.1} parent=5 // pred_check_branch
      %135 = sbr.rel (%p132) target = $region24
    $region23: #{_per_channel_min_max.1} parent=5 // pred_region
      %s136 = ssub.s32 %s9, 1
      %p137 = scmp.lt.s32.totalorder %s18, 1
      %s138 = scalar_select %p137, %s18, 1
      %p139 = scmp.lt.s32.totalorder %s19, 0
      %s140 = scalar_select %p139, %s19, 0
      %s141 = sadd.s32 %s140, %s138
      %s142 = smul.addr %s141, 8
      %s143 = scalar_lea.vmem %s0, %s142
      %p144 = pneg %p49
      %p145 = pneg %p46
      %p146 = pneg %p75
      %p147 = pneg %p72
      %p148 = scmp.lt.s32.totalorder %s18, 1
      %s149 = scalar_select %p148, %s18, 1
      %s150 = scalar_lea.vmem %s1, %s149
      %p151 = pneg %p101
      %p152 = pneg %p98
      %p153 = scmp.lt.s32.totalorder %s18, 1
      %s154 = scalar_select %p153, %s18, 1
      %s155 = scalar_lea.vmem %s2, %s154
      %p156 = scmp.lt.s32.totalorder %s18, 1
      %s157 = scalar_select %p156, %s18, 1
      %p158 = scmp.lt.s32.totalorder %s19, 0
      %s159 = scalar_select %p158, %s19, 0
      %s160 = sadd.s32 %s159, %s157
      %s161 = smul.addr %s160, 8
      %s162 = scalar_lea.vmem %s0, %s161
      %p163 = scmp.lt.s32.totalorder %s18, 1
      %s164 = scalar_select %p163, %s18, 1
      %s165 = scalar_lea.vmem %s1, %s164
      %p166 = scmp.lt.s32.totalorder %s18, 1
      %s167 = scalar_select %p166, %s18, 1
      %s168 = scalar_lea.vmem %s2, %s167
      %v169 = vld [vmem:[%s162] sm:$0xff]
      %v170 = vrot.slane %v169, 4
      %v171 = vmin.f32 %v169, %v170
      %v172 = vrot.slane %v171, 2
      %v173 = vmin.f32 %v171, %v172
      %v174 = vrot.slane %v173, 1
      %v175 = vmin.f32 %v173, %v174
      %v176 = vrot.slane %v169, 4
      %v177 = vmax.f32 %v169, %v176
      %v178 = vrot.slane %v177, 2
      %v179 = vmax.f32 %v177, %v178
      %v180 = vrot.slane %v179, 1
      %v181 = vmax.f32 %v179, %v180
      %p182 = scmp.eq.s32.totalorder %s19, 0
      // Predicated region
      $region25: #{_per_channel_min_max.1} parent=23 // pred_check
        %p183 = pneg %p182
      $region26: #{_per_channel_min_max.1} parent=23 // pred_check_branch
        %185 = sbr.rel (%p183) target = $region28
      $region27: #{_per_channel_min_max.1} parent=23 // pred_region
        %186 = vst [vmem:[%s165] sm:$0x1] %v175
        %187 = vst [vmem:[%s168] sm:$0x1] %v181
      $region28: #{_per_channel_min_max.1} parent=23 // pred_fallthru
        _
      %p188 = scmp.ne.s32.totalorder %s19, 0
      // Predicated region
      $region29: #{_per_channel_min_max.1} parent=23 // pred_check
        %p189 = pneg %p188
      $region30: #{_per_channel_min_max.1} parent=23 // pred_check_branch
        %191 = sbr.rel (%p189) target = $region32
      $region31: #{_per_channel_min_max.1} parent=23 // pred_region
        %v192 = vld [vmem:[%s165] sm:$0x1]
        %v193 = vmin.f32 %v192, %v175
        %194 = vst [vmem:[%s165] sm:$0x1] %v193
        %v195 = vld [vmem:[%s168] sm:$0x1]
        %v196 = vmax.f32 %v195, %v181
        %197 = vst [vmem:[%s168] sm:$0x1] %v196
      $region32: #{_per_channel_min_max.1} parent=23 // pred_fallthru
        _
      %p198 = scmp.lt.s32.totalorder %s18, 1
      %s199 = scalar_select %p198, %s18, 1
      %s200 = scalar_lea.vmem %s1, %s199
      %p201 = scmp.lt.s32.totalorder %s18, 1
      %s202 = scalar_select %p201, %s18, 1
      %s203 = scalar_lea.vmem %s2, %s202
      // Predicated region
      $region33: #{_per_channel_min_max.1} parent=23 // pred_check
        %p204 = pneg %p72
      $region34: #{_per_channel_min_max.1} parent=23 // pred_check_branch
        %206 = sbr.rel (%p204) target = $region36
      $region35: #{_per_channel_min_max.1} parent=23 // pred_region
        _
      $region36: #{_per_channel_min_max.1} parent=23 // pred_fallthru
        _
      // Predicated region
      $region37: #{_per_channel_min_max.1} parent=23 // pred_check
        %p207 = pneg %p98
      $region38: #{_per_channel_min_max.1} parent=23 // pred_check_branch
        %209 = sbr.rel (%p207) target = $region40
      $region39: #{_per_channel_min_max.1} parent=23 // pred_region
        _
      $region40: #{_per_channel_min_max.1} parent=23 // pred_fallthru
        _
    $region24: #{_per_channel_min_max.1} parent=5 // pred_fallthru
      _
    %p210 = scmp.le.s32.totalorder 2, %s9
    // Predicated region
    $region41: #{_per_channel_min_max.1} parent=5 // pred_check
      %p211 = pneg %p210
    $region42: #{_per_channel_min_max.1} parent=5 // pred_check_branch
      %213 = sbr.rel (%p211) target = $region44
    $region43: #{_per_channel_min_max.1} parent=5 // pred_region
      %s214 = ssub.s32 %s9, 2
      // Predicated region
      $region45: #{_per_channel_min_max.1} parent=43 // pred_check
        %p215 = pneg %p78
      $region46: #{_per_channel_min_max.1} parent=43 // pred_check_branch
        %217 = sbr.rel (%p215) target = $region48
      $region47: #{_per_channel_min_max.1} parent=43 // pred_region
        %p218 = scmp.lt.s32.totalorder %s20, 1
        %s219 = scalar_select %p218, %s20, 1
        %s220 = scalar_lea.vmem %s1, %s219
      $region48: #{_per_channel_min_max.1} parent=43 // pred_fallthru
        _
      // Predicated region
      $region49: #{_per_channel_min_max.1} parent=43 // pred_check
        %p221 = pneg %p104
      $region50: #{_per_channel_min_max.1} parent=43 // pred_check_branch
        %223 = sbr.rel (%p221) target = $region52
      $region51: #{_per_channel_min_max.1} parent=43 // pred_region
        %p224 = scmp.lt.s32.totalorder %s20, 1
        %s225 = scalar_select %p224, %s20, 1
        %s226 = scalar_lea.vmem %s2, %s225
      $region52: #{_per_channel_min_max.1} parent=43 // pred_fallthru
        _
    $region44: #{_per_channel_min_max.1} parent=5 // pred_fallthru
      _
  $region6: #{_per_channel_min_max.1} parent=0 // loop_footer
    %s13 = sadd.s32 1, %s9
  $region7: #{_per_channel_min_max.1} parent=0 // loop_footer_branch
    %8 = sbr.rel target = $region3
  $region8: #{_per_channel_min_max.1} parent=0 // loop_exit
    _

</llo_original>
